<compile_context>
chip_gen: v6e
topology: v6e:2x2x1
jax: 0.10.0
libtpu: 0.0.40
codegen_flags: <defaults>
</compile_context>

<pallas_src>
import jax
import jax.numpy as jnp
from jax.experimental import pallas as pl
from jax.experimental.pallas import tpu as pltpu

TEXT_HIDDEN = 768   # bert pooler_output size
IMAGE_OUT = 512     # resnet18 penultimate feature size
HIDDEN = 128
NUM_CLASSES = 1


def _classifier_kernel(text_ref, img_ref, w1t_ref, w1i_ref, b1_ref, w2_ref,
                       b2_ref, out_ref):
    """Fused: concat -> Linear -> ReLU -> (Dropout, eval=identity) -> Linear -> Sigmoid.

    Natural layout: batch rows on the sublane axis.
      text_ref: (tm, 768) f32    img_ref: (tm, 512) f32
      w1t_ref:  (768, 128) bf16  w1i_ref: (512, 128) bf16   (pre-transposed [in, out])
      b1_ref:   (1, 128) f32     w2_ref:  (1, 128) f32      b2_ref: (1,) f32 in SMEM
      out_ref:  (tm, 1) f32
    """
    # In-kernel bf16 cast of the activations (VPU, runs under the DMA shadow).
    # Feeding f32 from HBM and casting here is cheaper than a wrapper-side cast
    # pass (4 B/elem of total traffic instead of 4 + 2 + 2).
    x_t = text_ref[...].astype(jnp.bfloat16)
    x_i = img_ref[...].astype(jnp.bfloat16)

    # concat(text, img) @ W1^T  ==  text @ W1t + img @ W1i   (bf16 MXU, f32 accumulate)
    h = (jnp.dot(x_t, w1t_ref[...], preferred_element_type=jnp.float32)
         + jnp.dot(x_i, w1i_ref[...], preferred_element_type=jnp.float32)
         + b1_ref[...])                          # (tm, 128), bias broadcast over rows
    h = jnp.maximum(h, 0.0)                      # ReLU (f32 VPU)
    # TODO(synk): Dropout(0.3) is identity at inference (eval mode); a
    #             training-mode pltpu.prng_* masked path is not emitted here.

    # Second Linear has out_features=1: VPU multiply + cross-lane reduce instead
    # of an almost-empty MXU matmul (runs under DMA slack).
    logits = jnp.sum(h * w2_ref[...], axis=1, keepdims=True) + b2_ref[0]   # (tm, 1)

    # Sigmoid: EUP exp + exact reciprocal (approx=True error is near the test tol).
    out_ref[...] = pl.reciprocal(1.0 + jnp.exp(-logits), approx=False)


def _round_up(x, m):
    return (x + m - 1) // m * m


def depression_classifier_head(text_feat, img_feat, params, *, tile_m=1024):
    """Pallas classifier head.  text_feat: [B, 768] f32, img_feat: [B, 512] f32 -> [B, 1] f32."""
    w1t, w1i, b1, w2, b2 = params
    B = text_feat.shape[0]

    # Batch-row tile.  No activation padding in the wrapper: grid = cdiv(B, tm)
    # and the last tile is ragged / masked by the pipeline.
    tm = min(tile_m, _round_up(B, 128))
    if B >= 256:
        # >= 2 grid steps so the "parallel" axis shards across both TensorCores
        # on v7x, and tile waste is never more than the ragged tail.
        tm = min(tm, _round_up((B + 1) // 2, 128))
    if tm >= B:
        tm = B          # one exact full-array block for small batches (no ragged edge)
    grid = (pl.cdiv(B, tm),)

    return pl.pallas_call(
        _classifier_kernel,
        out_shape=jax.ShapeDtypeStruct((B, NUM_CLASSES), jnp.float32),
        grid=grid,
        in_specs=[
            pl.BlockSpec((tm, TEXT_HIDDEN), lambda i: (i, 0)),       # activations (pipelined)
            pl.BlockSpec((tm, IMAGE_OUT), lambda i: (i, 0)),         # activations (pipelined)
            pl.BlockSpec((TEXT_HIDDEN, HIDDEN), lambda i: (0, 0)),   # W1 text part: VMEM-resident
            pl.BlockSpec((IMAGE_OUT, HIDDEN), lambda i: (0, 0)),     # W1 image part: VMEM-resident
            pl.BlockSpec((1, HIDDEN), lambda i: (0, 0)),             # b1
            pl.BlockSpec((1, HIDDEN), lambda i: (0, 0)),             # w2 row
            pl.BlockSpec(memory_space=pltpu.MemorySpace.SMEM),       # b2 scalar
        ],
        out_specs=pl.BlockSpec((tm, NUM_CLASSES), lambda i: (i, 0)),
        compiler_params=pltpu.CompilerParams(
            dimension_semantics=("parallel",)),
        # NOTE: the constant-index weight specs could take pipeline_mode=pl.Buffered(1)
        # to save one ~0.4 MB buffer copy; only relevant at tm=2048 on v7x.
    )(text_feat, img_feat, w1t, w1i, b1, w2, b2)


def init_params(key):
    """nn.Linear-style init (uniform +-1/sqrt(fan_in)).

    Weights are pre-split (concat fusion), pre-transposed to [in, out] and
    pre-cast to bf16 ONCE here so the per-call wrapper does zero parameter work.
    """
    k1, k2, k3, k4 = jax.random.split(key, 4)
    fan1 = TEXT_HIDDEN + IMAGE_OUT
    bound1 = float(fan1) ** -0.5
    w1 = jax.random.uniform(k1, (HIDDEN, fan1), jnp.float32, -bound1, bound1)   # torch [out, in]
    b1 = jax.random.uniform(k2, (1, HIDDEN), jnp.float32, -bound1, bound1)      # (1, 128)
    bound2 = float(HIDDEN) ** -0.5
    w2 = jax.random.uniform(k3, (NUM_CLASSES, HIDDEN), jnp.float32, -bound2, bound2)  # (1, 128)
    b2 = jax.random.uniform(k4, (NUM_CLASSES,), jnp.float32, -bound2, bound2)         # (1,)
    w1t = jnp.asarray(w1[:, :TEXT_HIDDEN].T, dtype=jnp.bfloat16)   # (768, 128) bf16
    w1i = jnp.asarray(w1[:, TEXT_HIDDEN:].T, dtype=jnp.bfloat16)   # (512, 128) bf16
    return (w1t, w1i, b1, w2, b2)


def reference_head(text_feat, img_feat, params):
    """Plain-JAX reference (eval mode), mirroring the kernel's bf16-MXU / f32-accum path.
    Note: the activation bf16 cast is a deliberate numeric deviation from the f32
    PyTorch head (MXU fast path); the reference mirrors it."""
    w1t, w1i, b1, w2, b2 = params
    h = (jnp.dot(text_feat.astype(jnp.bfloat16), w1t, preferred_element_type=jnp.float32)
         + jnp.dot(img_feat.astype(jnp.bfloat16), w1i, preferred_element_type=jnp.float32)
         + b1)
    h = jnp.maximum(h, 0.0)
    logits = jnp.sum(h * w2, axis=1, keepdims=True) + b2
    return jax.nn.sigmoid(logits)


def depression_head(text_feat, img_feat, params, *, small_batch_threshold=128):
    """Production dispatch: tiny batches are pure fixed cost for a pallas_call,
    so they bypass to the plain-JAX head; larger batches run the fused kernel."""
    if text_feat.shape[0] < small_batch_threshold:
        return reference_head(text_feat, img_feat, params)
    return depression_classifier_head(text_feat, img_feat, params)


if __name__ == "__main__":
    key = jax.random.PRNGKey(0)
    kp, kt, ki, kid, kim, kt2, ki2 = jax.random.split(key, 7)

    params = init_params(kp)

    # Original forward-signature inputs (consumed only by the frozen backbones).
    B, SEQ = 2, 8
    input_ids = jax.random.randint(kid, (B, SEQ), 0, 30522, dtype=jnp.int32)
    attention_mask = jnp.ones((B, SEQ), dtype=jnp.int32)
    image = jax.random.normal(kim, (B, 3, 16, 16), dtype=jnp.float32)  # NCHW

    # TODO(synk): frozen pretrained BERT / ResNet18 backbones are checkpoint-defined and
    # cannot be reproduced in-script; deterministic surrogate features of the correct
    # shapes stand in for bert(...).pooler_output and cnn(image).flatten(1).
    text_feat = jax.random.normal(kt, (B, TEXT_HIDDEN), dtype=jnp.float32)
    img_feat = jax.random.normal(ki, (B, IMAGE_OUT), dtype=jnp.float32)

    out = depression_classifier_head(text_feat, img_feat, params)
    out = jax.block_until_ready(out)
    ref = reference_head(text_feat, img_feat, params)
    assert out.shape == (B, NUM_CLASSES), out.shape
    assert jnp.allclose(out, ref, atol=2e-3, rtol=2e-3), (out, ref)

    # Second check: multi-step grid with a ragged last tile (exercises the
    # pipelined / two-TensorCore path with zero wrapper-side padding).
    B2 = 300
    text_feat2 = jax.random.normal(kt2, (B2, TEXT_HIDDEN), dtype=jnp.float32)
    img_feat2 = jax.random.normal(ki2, (B2, IMAGE_OUT), dtype=jnp.float32)
    out2 = jax.block_until_ready(
        depression_classifier_head(text_feat2, img_feat2, params))
    ref2 = reference_head(text_feat2, img_feat2, params)
    assert out2.shape == (B2, NUM_CLASSES), out2.shape
    assert jnp.allclose(out2, ref2, atol=2e-3, rtol=2e-3), (out2, ref2)

    print("KERNEL_OK")
</pallas_src>

<mosaic_0001>
module attributes {stable_mosaic.version = 11 : i64} {
  func.func @_classifier_kernel(%arg0: i32, %arg1: memref<2x768xf32, #tpu.memory_space<vmem>>, %arg2: memref<2x512xf32, #tpu.memory_space<vmem>>, %arg3: memref<768x128xbf16, #tpu.memory_space<vmem>>, %arg4: memref<512x128xbf16, #tpu.memory_space<vmem>>, %arg5: memref<1x128xf32, #tpu.memory_space<vmem>>, %arg6: memref<1x128xf32, #tpu.memory_space<vmem>>, %arg7: memref<1xf32, #tpu.memory_space<smem>>, %arg8: memref<2x1xf32, #tpu.memory_space<vmem>>) attributes {dimension_semantics = [#tpu.dimension_semantics<parallel>], iteration_bounds = array<i64: 1>, scalar_prefetch = 0 : i64, scratch_operands = 0 : i64, tpu.core_type = #tpu.core_type<tc>, window_params = [{transform_indices = @transform_0, window_bounds = array<i64: 2, 768>}, {transform_indices = @transform_1, window_bounds = array<i64: 2, 512>}, {pipeline_mode = #tpu.pipeline_mode<synchronous>, transform_indices = @transform_2, window_bounds = array<i64: 768, 128>}, {pipeline_mode = #tpu.pipeline_mode<synchronous>, transform_indices = @transform_3, window_bounds = array<i64: 512, 128>}, {pipeline_mode = #tpu.pipeline_mode<synchronous>, transform_indices = @transform_4, window_bounds = array<i64: 1, 128>}, {pipeline_mode = #tpu.pipeline_mode<synchronous>, transform_indices = @transform_5, window_bounds = array<i64: 1, 128>}, {transform_indices = @transform_6, window_bounds = array<i64: 1>}, {transform_indices = @transform_7, window_bounds = array<i64: 2, 1>}]} {
    %c0 = arith.constant 0 : index
    %c0_0 = arith.constant 0 : index
    %0 = vector.load %arg1[%c0, %c0_0] : memref<2x768xf32, #tpu.memory_space<vmem>>, vector<2x768xf32>
    %1 = arith.truncf %0 : vector<2x768xf32> to vector<2x768xbf16>
    %c0_1 = arith.constant 0 : index
    %c0_2 = arith.constant 0 : index
    %2 = vector.load %arg2[%c0_1, %c0_2] : memref<2x512xf32, #tpu.memory_space<vmem>>, vector<2x512xf32>
    %3 = arith.truncf %2 : vector<2x512xf32> to vector<2x512xbf16>
    %c0_3 = arith.constant 0 : index
    %c0_4 = arith.constant 0 : index
    %4 = vector.load %arg3[%c0_3, %c0_4] : memref<768x128xbf16, #tpu.memory_space<vmem>>, vector<768x128xbf16>
    %cst = arith.constant dense<0.000000e+00> : vector<2x128xf32>
    %5 = tpu.matmul %1, %4, %cst {dimension_numbers = #tpu.dot_dimension_numbers<[1], [0], [0], [1], [0, 0, 1, 1], [], []>} : vector<2x768xbf16>, vector<768x128xbf16>, vector<2x128xf32> -> vector<2x128xf32>
    %c0_5 = arith.constant 0 : index
    %c0_6 = arith.constant 0 : index
    %6 = vector.load %arg4[%c0_5, %c0_6] : memref<512x128xbf16, #tpu.memory_space<vmem>>, vector<512x128xbf16>
    %cst_7 = arith.constant dense<0.000000e+00> : vector<2x128xf32>
    %7 = tpu.matmul %3, %6, %cst_7 {dimension_numbers = #tpu.dot_dimension_numbers<[1], [0], [0], [1], [0, 0, 1, 1], [], []>} : vector<2x512xbf16>, vector<512x128xbf16>, vector<2x128xf32> -> vector<2x128xf32>
    %8 = arith.addf %5, %7 : vector<2x128xf32>
    %c0_8 = arith.constant 0 : index
    %c0_9 = arith.constant 0 : index
    %9 = vector.load %arg5[%c0_8, %c0_9] : memref<1x128xf32, #tpu.memory_space<vmem>>, vector<1x128xf32>
    %10 = vector.broadcast %9 : vector<1x128xf32> to vector<2x128xf32>
    %11 = arith.addf %8, %10 : vector<2x128xf32>
    %cst_10 = arith.constant 0.000000e+00 : f32
    %12 = vector.broadcast %cst_10 : f32 to vector<2x128xf32>
    %13 = arith.maximumf %11, %12 : vector<2x128xf32>
    %c0_11 = arith.constant 0 : index
    %c0_12 = arith.constant 0 : index
    %14 = vector.load %arg6[%c0_11, %c0_12] : memref<1x128xf32, #tpu.memory_space<vmem>>, vector<1x128xf32>
    %15 = vector.broadcast %14 : vector<1x128xf32> to vector<2x128xf32>
    %16 = arith.mulf %13, %15 : vector<2x128xf32>
    %cst_13 = arith.constant dense<0.000000e+00> : vector<2xf32>
    %17 = vector.multi_reduction <add>, %16, %cst_13 [1] : vector<2x128xf32> to vector<2xf32>
    %18 = vector.shape_cast %17 : vector<2xf32> to vector<2x1xf32>
    %c0_14 = arith.constant 0 : index
    %19 = memref.load %arg7[%c0_14] : memref<1xf32, #tpu.memory_space<smem>>
    %20 = vector.broadcast %19 : f32 to vector<2x1xf32>
    %21 = arith.addf %18, %20 : vector<2x1xf32>
    %cst_15 = arith.constant 0.000000e+00 : f32
    %22 = vector.broadcast %cst_15 : f32 to vector<2x1xf32>
    %23 = arith.subf %22, %21 : vector<2x1xf32>
    %24 = math.exp %23 : vector<2x1xf32>
    %cst_16 = arith.constant 1.000000e+00 : f32
    %25 = vector.broadcast %cst_16 : f32 to vector<2x1xf32>
    %26 = arith.addf %25, %24 : vector<2x1xf32>
    %27 = tpu.reciprocal %26 : vector<2x1xf32> -> vector<2x1xf32>
    %c0_17 = arith.constant 0 : index
    %c0_18 = arith.constant 0 : index
    %28 = vector.load %arg8[%c0_17, %c0_18] : memref<2x1xf32, #tpu.memory_space<vmem>>, vector<2x1xf32>
    tpu.vector_store %arg8[%c0_17, %c0_18], %27 {strides = array<i32>} : memref<2x1xf32, #tpu.memory_space<vmem>>, vector<2x1xf32>,
    return
  }
  func.func @transform_0(%arg0: i32) -> (i32, i32) {
    %c0_i32 = arith.constant 0 : i32
    %c0_i32_0 = arith.constant 0 : i32
    return %arg0, %c0_i32 : i32, i32
  }
  func.func @transform_1(%arg0: i32) -> (i32, i32) {
    %c0_i32 = arith.constant 0 : i32
    %c0_i32_0 = arith.constant 0 : i32
    return %arg0, %c0_i32 : i32, i32
  }
  func.func @transform_2(%arg0: i32) -> (i32, i32) {
    %c0_i32 = arith.constant 0 : i32
    %c0_i32_0 = arith.constant 0 : i32
    %c0_i32_1 = arith.constant 0 : i32
    return %c0_i32, %c0_i32_0 : i32, i32
  }
  func.func @transform_3(%arg0: i32) -> (i32, i32) {
    %c0_i32 = arith.constant 0 : i32
    %c0_i32_0 = arith.constant 0 : i32
    %c0_i32_1 = arith.constant 0 : i32
    return %c0_i32, %c0_i32_0 : i32, i32
  }
  func.func @transform_4(%arg0: i32) -> (i32, i32) {
    %c0_i32 = arith.constant 0 : i32
    %c0_i32_0 = arith.constant 0 : i32
    %c0_i32_1 = arith.constant 0 : i32
    return %c0_i32, %c0_i32_0 : i32, i32
  }
  func.func @transform_5(%arg0: i32) -> (i32, i32) {
    %c0_i32 = arith.constant 0 : i32
    %c0_i32_0 = arith.constant 0 : i32
    %c0_i32_1 = arith.constant 0 : i32
    return %c0_i32, %c0_i32_0 : i32, i32
  }
  func.func @transform_6(%arg0: i32) -> i32 {
    %c0_i32 = arith.constant 0 : i32
    %c0_i32_0 = arith.constant 0 : i32
    return %c0_i32 : i32
  }
  func.func @transform_7(%arg0: i32) -> (i32, i32) {
    %c0_i32 = arith.constant 0 : i32
    %c0_i32_0 = arith.constant 0 : i32
    return %arg0, %c0_i32 : i32, i32
  }
}

</mosaic_0001>

<llo_original>
// kernel: tpu_custom_call.1
$region0: #{tpu_custom_call.1}
  #allocation0 [shape = 'u32[]', space=smem, size = 0x4, offset = 0x4, fixed_abs, tag = 'smem constant byte address 0x4 - core index']
  #allocation1 [shape = 'u32[144,128]{1,0:T(1,128)}', space=vmem, size = 0x12000, scoped, tag = 'internal scratch']
  #allocation2 [shape = 'f32[1]{0:T(128)S(6)}', space=smem, size = 0x200, scoped, tag = 'scoped memory for tpu_custom_call.1']
  %s0 = inlined_call_operand.hbm [shape: f32[2,768], index: 0, kind: input, shape index: {}]
  %s1 = inlined_call_operand.hbm [shape: f32[2,512], index: 1, kind: input, shape index: {}]
  %s2 = inlined_call_operand.hbm [shape: bf16[768,128], index: 2, kind: input, shape index: {}]
  %s3 = inlined_call_operand.hbm [shape: bf16[512,128], index: 3, kind: input, shape index: {}]
  %s4 = inlined_call_operand.vmem [shape: f32[1,128], index: 4, kind: input, shape index: {}]
  %s5 = inlined_call_operand.vmem [shape: f32[1,128], index: 5, kind: input, shape index: {}]
  %s6 = inlined_call_operand.<no memory space> [shape: f32[1], index: 6, kind: input, shape index: {}]
  %s7 = inlined_call_operand.vmem [shape: f32[2,1], index: 7, kind: output, shape index: {}]
  %s8 = sld [smem:[#allocation0]]
  $region54: #{tpu_custom_call.1} parent=0
    _
  %s10 = ssub.s32 1, %s8
  %s11 = scalar_select 0, %s10, %s8
  %12 = sst [smem:[#allocation2]] %s6
  $region1: #{tpu_custom_call.1} parent=0
    #allocation3 [shape = 'u8[6144]{0}', space=vmem, size = 0x1800, scoped, tag = 'input window, operand 0, single buffered']
    #allocation4 [shape = 's32[1]{0}', space=sflag, size = 0x4, scoped, tag = 'scoped memory for tpu_custom_call.1']
    #allocation5 [shape = 'u8[4096]{0}', space=vmem, size = 0x1000, scoped, tag = 'input window, operand 1, single buffered']
    #allocation6 [shape = 's32[1]{0}', space=sflag, size = 0x4, scoped, tag = 'scoped memory for tpu_custom_call.1']
    #allocation7 [shape = 'u8[196608]{0}', space=vmem, size = 0x30000, scoped, tag = 'input window, operand 2, single buffered']
    #allocation8 [shape = 'u8[131072]{0}', space=vmem, size = 0x20000, scoped, tag = 'input window, operand 3, single buffered']
    #allocation9 [shape = 's32[1]{0}', space=sflag, size = 0x4, scoped, tag = 'scoped memory for tpu_custom_call.1']
    %13 = vsyncpa [#allocation4], 0
    %14 = vsyncpa [#allocation6], 0
    %15 = vsyncpa [#allocation9], 0
    // Predicated region
    $region2: #{tpu_custom_call.1} parent=1 // pred_check
      _
    $region3: #{tpu_custom_call.1} parent=1 // pred_check_branch
      %17 = sbr.rel (0) target = $region5
    $region4: #{tpu_custom_call.1} parent=1 // pred_region
      %s19 = ssub.s32 192, 192
      %20 = vsyncadd [#allocation4], %s19
      %s22 = sshll.u32 [#allocation3], 4
      %s23 = int_to_ptr.vmem [resolvable:$true] %s22
      %25 = dma.hbm_to_vmem [thread:$0]  %s0, 192, %s23, [#allocation4]
    $region5: #{tpu_custom_call.1} parent=1 // pred_fallthru
      _
    // Predicated region
    $region6: #{tpu_custom_call.1} parent=1 // pred_check
      _
    $region7: #{tpu_custom_call.1} parent=1 // pred_check_branch
      %27 = sbr.rel (0) target = $region9
    $region8: #{tpu_custom_call.1} parent=1 // pred_region
      %s29 = ssub.s32 128, 128
      %30 = vsyncadd [#allocation6], %s29
      %s32 = sshll.u32 [#allocation5], 4
      %s33 = int_to_ptr.vmem [resolvable:$true] %s32
      %35 = dma.hbm_to_vmem [thread:$0]  %s1, 128, %s33, [#allocation6]
    $region9: #{tpu_custom_call.1} parent=1 // pred_fallthru
      _
    // Predicated region
    $region10: #{tpu_custom_call.1} parent=1 // pred_check
      _
    $region11: #{tpu_custom_call.1} parent=1 // pred_check_branch
      %37 = sbr.rel (0) target = $region13
    $region12: #{tpu_custom_call.1} parent=1 // pred_region
      %s39 = ssub.s32 6144, 6144
      %40 = vsyncadd [#allocation6], %s39
      %s41 = sshll.u32 [#allocation7], 4
      %s42 = int_to_ptr.vmem [resolvable:$true] %s41
      %47 = dma.hbm_to_vmem [thread:$0]  %s2, 6144, %s42, [#allocation6], 64, 64, 4
    $region13: #{tpu_custom_call.1} parent=1 // pred_fallthru
      _
    // Predicated region
    $region14: #{tpu_custom_call.1} parent=1 // pred_check
      _
    $region15: #{tpu_custom_call.1} parent=1 // pred_check_branch
      %49 = sbr.rel (0) target = $region17
    $region16: #{tpu_custom_call.1} parent=1 // pred_region
      %s51 = ssub.s32 4096, 4096
      %52 = vsyncadd [#allocation9], %s51
      %s53 = sshll.u32 [#allocation8], 4
      %s54 = int_to_ptr.vmem [resolvable:$true] %s53
      %59 = dma.hbm_to_vmem [thread:$0]  %s3, 4096, %s54, [#allocation9], 64, 64, 4
    $region17: #{tpu_custom_call.1} parent=1 // pred_fallthru
      _
    // Predicated region
    $region18: #{tpu_custom_call.1} parent=1 // pred_check
      _
    $region19: #{tpu_custom_call.1} parent=1 // pred_check_branch
      %61 = sbr.rel (0) target = $region21
    $region20: #{tpu_custom_call.1} parent=1 // pred_region
      _
    $region21: #{tpu_custom_call.1} parent=1 // pred_fallthru
      _
    // Predicated region
    $region22: #{tpu_custom_call.1} parent=1 // pred_check
      _
    $region23: #{tpu_custom_call.1} parent=1 // pred_check_branch
      %63 = sbr.rel (0) target = $region25
    $region24: #{tpu_custom_call.1} parent=1 // pred_region
      _
    $region25: #{tpu_custom_call.1} parent=1 // pred_fallthru
      _
    // Predicated region
    $region26: #{tpu_custom_call.1} parent=1 // pred_check
      _
    $region27: #{tpu_custom_call.1} parent=1 // pred_check_branch
      %65 = sbr.rel (0) target = $region29
    $region28: #{tpu_custom_call.1} parent=1 // pred_region
      _
    $region29: #{tpu_custom_call.1} parent=1 // pred_fallthru
      _
    // Predicated region
    $region30: #{tpu_custom_call.1} parent=1 // pred_check
      _
    $region31: #{tpu_custom_call.1} parent=1 // pred_check_branch
      %67 = sbr.rel (0) target = $region33
    $region32: #{tpu_custom_call.1} parent=1 // pred_region
      %68 = dma.done [#allocation4], 192
    $region33: #{tpu_custom_call.1} parent=1 // pred_fallthru
      _
    // Predicated region
    $region34: #{tpu_custom_call.1} parent=1 // pred_check
      _
    $region35: #{tpu_custom_call.1} parent=1 // pred_check_branch
      %70 = sbr.rel (0) target = $region37
    $region36: #{tpu_custom_call.1} parent=1 // pred_region
      %71 = dma.done [#allocation6], 128
    $region37: #{tpu_custom_call.1} parent=1 // pred_fallthru
      _
    // Predicated region
    $region38: #{tpu_custom_call.1} parent=1 // pred_check
      _
    $region39: #{tpu_custom_call.1} parent=1 // pred_check_branch
      %73 = sbr.rel (0) target = $region41
    $region40: #{tpu_custom_call.1} parent=1 // pred_region
      %74 = dma.done [#allocation6], 6144
    $region41: #{tpu_custom_call.1} parent=1 // pred_fallthru
      _
    // Predicated region
    $region42: #{tpu_custom_call.1} parent=1 // pred_check
      _
    $region43: #{tpu_custom_call.1} parent=1 // pred_check_branch
      %76 = sbr.rel (0) target = $region45
    $region44: #{tpu_custom_call.1} parent=1 // pred_region
      %77 = dma.done [#allocation9], 4096
    $region45: #{tpu_custom_call.1} parent=1 // pred_fallthru
      _
    %v79 = vld [vmem:[#allocation3] sm:$0xff]
    %v80 = vld [vmem:[#allocation3 + $0x8] sm:$0xf]
    %v83 = vcombine.high %v79, %v79
    %v85 = vunpack.c.l.s4 1983009808
    %v86 = vunpack.c.0.s8 %v85
    %v87 = vlaneseq
    %v88 = vshrl.u32 %v87, 7
    %v89 = vsub.s32 %v86, %v88
    %v90 = vrot.slane %v79, %v89
    %v92 = vunpack.c.l.s4 1983009808
    %v93 = vunpack.c.0.s8 %v92
    %v94 = vlaneseq
    %v95 = vshrl.u32 %v94, 7
    %v96 = vsub.s32 %v93, %v95
    %v97 = vrot.slane %v83, %v96
    %v98 = vcombine.high %v90, %v90
    %v99 = vcombine.high %v97, %v97
    %v101 = vunpack.c.l.s4 1983009808
    %v102 = vunpack.c.0.s8 %v101
    %v103 = vlaneseq
    %v104 = vshrl.u32 %v103, 7
    %v105 = vsub.s32 %v102, %v104
    %v106 = vrot.slane %v80, %v105
    %v107 = vcombine.high %v106, %v106
    %v114 = vpack.c.bf16 %v90, %v90
    %v115 = vpack.c.bf16 %v98, %v98
    %v116 = vpack.c.bf16 %v97, %v97
    %v117 = vpack.c.bf16 %v99, %v99
    %v118 = vpack.c.bf16 %v106, %v106
    %v119 = vpack.c.bf16 %v107, %v107
    %v120 = vld [vmem:[#allocation5] sm:$0xff]
    %v122 = vcombine.high %v120, %v120
    %v124 = vunpack.c.l.s4 1983009808
    %v125 = vunpack.c.0.s8 %v124
    %v126 = vlaneseq
    %v127 = vshrl.u32 %v126, 7
    %v128 = vsub.s32 %v125, %v127
    %v129 = vrot.slane %v120, %v128
    %v131 = vunpack.c.l.s4 1983009808
    %v132 = vunpack.c.0.s8 %v131
    %v133 = vlaneseq
    %v134 = vshrl.u32 %v133, 7
    %v135 = vsub.s32 %v132, %v134
    %v136 = vrot.slane %v122, %v135
    %v137 = vcombine.high %v129, %v129
    %v138 = vcombine.high %v136, %v136
    %v143 = vpack.c.bf16 %v129, %v129
    %v144 = vpack.c.bf16 %v137, %v137
    %v145 = vpack.c.bf16 %v136, %v136
    %v146 = vpack.c.bf16 %v138, %v138
    %v147 = vld [vmem:[#allocation7] sm:$0xf]
    %v148 = vld [vmem:[#allocation7 + $0x4] sm:$0xf]
    %v149 = vld [vmem:[#allocation7 + $0x8] sm:$0xf]
    %v150 = vld [vmem:[#allocation7 + $0xc] sm:$0xf]
    %v151 = vld [vmem:[#allocation7 + $0x10] sm:$0xf]
    %v152 = vld [vmem:[#allocation7 + $0x14] sm:$0xf]
    %v153 = vld [vmem:[#allocation7 + $0x18] sm:$0xf]
    %v154 = vld [vmem:[#allocation7 + $0x1c] sm:$0xf]
    %v155 = vld [vmem:[#allocation7 + $0x20] sm:$0xf]
    %v156 = vld [vmem:[#allocation7 + $0x24] sm:$0xf]
    %v157 = vld [vmem:[#allocation7 + $0x28] sm:$0xf]
    %v158 = vld [vmem:[#allocation7 + $0x2c] sm:$0xf]
    %v159 = vld [vmem:[#allocation7 + $0x30] sm:$0xf]
    %v160 = vld [vmem:[#allocation7 + $0x34] sm:$0xf]
    %v161 = vld [vmem:[#allocation7 + $0x38] sm:$0xf]
    %v162 = vld [vmem:[#allocation7 + $0x3c] sm:$0xf]
    %v163 = vld [vmem:[#allocation7 + $0x40] sm:$0xf]
    %v164 = vld [vmem:[#allocation7 + $0x44] sm:$0xf]
    %v165 = vld [vmem:[#allocation7 + $0x48] sm:$0xf]
    %v166 = vld [vmem:[#allocation7 + $0x4c] sm:$0xf]
    %v167 = vld [vmem:[#allocation7 + $0x50] sm:$0xf]
    %v168 = vld [vmem:[#allocation7 + $0x54] sm:$0xf]
    %v169 = vld [vmem:[#allocation7 + $0x58] sm:$0xf]
    %v170 = vld [vmem:[#allocation7 + $0x5c] sm:$0xf]
    %v171 = vld [vmem:[#allocation7 + $0x60] sm:$0xf]
    %v172 = vld [vmem:[#allocation7 + $0x64] sm:$0xf]
    %v173 = vld [vmem:[#allocation7 + $0x68] sm:$0xf]
    %v174 = vld [vmem:[#allocation7 + $0x6c] sm:$0xf]
    %v175 = vld [vmem:[#allocation7 + $0x70] sm:$0xf]
    %v176 = vld [vmem:[#allocation7 + $0x74] sm:$0xf]
    %v177 = vld [vmem:[#allocation7 + $0x78] sm:$0xf]
    %v178 = vld [vmem:[#allocation7 + $0x7c] sm:$0xf]
    %v179 = vld [vmem:[#allocation7 + $0x80] sm:$0xf]
    %v180 = vld [vmem:[#allocation7 + $0x84] sm:$0xf]
    %v181 = vld [vmem:[#allocation7 + $0x88] sm:$0xf]
    %v182 = vld [vmem:[#allocation7 + $0x8c] sm:$0xf]
    %v183 = vld [vmem:[#allocation7 + $0x90] sm:$0xf]
    %v184 = vld [vmem:[#allocation7 + $0x94] sm:$0xf]
    %v185 = vld [vmem:[#allocation7 + $0x98] sm:$0xf]
    %v186 = vld [vmem:[#allocation7 + $0x9c] sm:$0xf]
    %v187 = vld [vmem:[#allocation7 + $0xa0] sm:$0xf]
    %v188 = vld [vmem:[#allocation7 + $0xa4] sm:$0xf]
    %v189 = vld [vmem:[#allocation7 + $0xa8] sm:$0xf]
    %v190 = vld [vmem:[#allocation7 + $0xac] sm:$0xf]
    %v191 = vld [vmem:[#allocation7 + $0xb0] sm:$0xf]
    %v192 = vld [vmem:[#allocation7 + $0xb4] sm:$0xf]
    %v193 = vld [vmem:[#allocation7 + $0xb8] sm:$0xf]
    %v194 = vld [vmem:[#allocation7 + $0xbc] sm:$0xf]
    %v195 = vld [vmem:[#allocation7 + $0xc0] sm:$0xf]
    %v196 = vld [vmem:[#allocation7 + $0xc4] sm:$0xf]
    %v197 = vld [vmem:[#allocation7 + $0xc8] sm:$0xf]
    %v198 = vld [vmem:[#allocation7 + $0xcc] sm:$0xf]
    %v199 = vld [vmem:[#allocation7 + $0xd0] sm:$0xf]
    %v200 = vld [vmem:[#allocation7 + $0xd4] sm:$0xf]
    %v201 = vld [vmem:[#allocation7 + $0xd8] sm:$0xf]
    %v202 = vld [vmem:[#allocation7 + $0xdc] sm:$0xf]
    %v203 = vld [vmem:[#allocation7 + $0xe0] sm:$0xf]
    %v204 = vld [vmem:[#allocation7 + $0xe4] sm:$0xf]
    %v205 = vld [vmem:[#allocation7 + $0xe8] sm:$0xf]
    %v206 = vld [vmem:[#allocation7 + $0xec] sm:$0xf]
    %v207 = vld [vmem:[#allocation7 + $0xf0] sm:$0xf]
    %v208 = vld [vmem:[#allocation7 + $0xf4] sm:$0xf]
    %v209 = vld [vmem:[#allocation7 + $0xf8] sm:$0xf]
    %v210 = vld [vmem:[#allocation7 + $0xfc] sm:$0xf]
    %v211 = vld [vmem:[#allocation7 + $0x100] sm:$0xf]
    %v212 = vld [vmem:[#allocation7 + $0x104] sm:$0xf]
    %v213 = vld [vmem:[#allocation7 + $0x108] sm:$0xf]
    %v214 = vld [vmem:[#allocation7 + $0x10c] sm:$0xf]
    %v215 = vld [vmem:[#allocation7 + $0x110] sm:$0xf]
    %v216 = vld [vmem:[#allocation7 + $0x114] sm:$0xf]
    %v217 = vld [vmem:[#allocation7 + $0x118] sm:$0xf]
    %v218 = vld [vmem:[#allocation7 + $0x11c] sm:$0xf]
    %v219 = vld [vmem:[#allocation7 + $0x120] sm:$0xf]
    %v220 = vld [vmem:[#allocation7 + $0x124] sm:$0xf]
    %v221 = vld [vmem:[#allocation7 + $0x128] sm:$0xf]
    %v222 = vld [vmem:[#allocation7 + $0x12c] sm:$0xf]
    %v223 = vld [vmem:[#allocation7 + $0x130] sm:$0xf]
    %v224 = vld [vmem:[#allocation7 + $0x134] sm:$0xf]
    %v225 = vld [vmem:[#allocation7 + $0x138] sm:$0xf]
    %v226 = vld [vmem:[#allocation7 + $0x13c] sm:$0xf]
    %v227 = vld [vmem:[#allocation7 + $0x140] sm:$0xf]
    %v228 = vld [vmem:[#allocation7 + $0x144] sm:$0xf]
    %v229 = vld [vmem:[#allocation7 + $0x148] sm:$0xf]
    %v230 = vld [vmem:[#allocation7 + $0x14c] sm:$0xf]
    %v231 = vld [vmem:[#allocation7 + $0x150] sm:$0xf]
    %v232 = vld [vmem:[#allocation7 + $0x154] sm:$0xf]
    %v233 = vld [vmem:[#allocation7 + $0x158] sm:$0xf]
    %v234 = vld [vmem:[#allocation7 + $0x15c] sm:$0xf]
    %v235 = vld [vmem:[#allocation7 + $0x160] sm:$0xf]
    %v236 = vld [vmem:[#allocation7 + $0x164] sm:$0xf]
    %v237 = vld [vmem:[#allocation7 + $0x168] sm:$0xf]
    %v238 = vld [vmem:[#allocation7 + $0x16c] sm:$0xf]
    %v239 = vld [vmem:[#allocation7 + $0x170] sm:$0xf]
    %v240 = vld [vmem:[#allocation7 + $0x174] sm:$0xf]
    %v241 = vld [vmem:[#allocation7 + $0x178] sm:$0xf]
    %v242 = vld [vmem:[#allocation7 + $0x17c] sm:$0xf]
    %v243 = vld [vmem:[#allocation8] sm:$0xf]
    %v244 = vld [vmem:[#allocation8 + $0x4] sm:$0xf]
    %v245 = vld [vmem:[#allocation8 + $0x8] sm:$0xf]
    %v246 = vld [vmem:[#allocation8 + $0xc] sm:$0xf]
    %v247 = vld [vmem:[#allocation8 + $0x10] sm:$0xf]
    %v248 = vld [vmem:[#allocation8 + $0x14] sm:$0xf]
    %v249 = vld [vmem:[#allocation8 + $0x18] sm:$0xf]
    %v250 = vld [vmem:[#allocation8 + $0x1c] sm:$0xf]
    %v251 = vld [vmem:[#allocation8 + $0x20] sm:$0xf]
    %v252 = vld [vmem:[#allocation8 + $0x24] sm:$0xf]
    %v253 = vld [vmem:[#allocation8 + $0x28] sm:$0xf]
    %v254 = vld [vmem:[#allocation8 + $0x2c] sm:$0xf]
    %v255 = vld [vmem:[#allocation8 + $0x30] sm:$0xf]
    %v256 = vld [vmem:[#allocation8 + $0x34] sm:$0xf]
    %v257 = vld [vmem:[#allocation8 + $0x38] sm:$0xf]
    %v258 = vld [vmem:[#allocation8 + $0x3c] sm:$0xf]
    %v259 = vld [vmem:[#allocation8 + $0x40] sm:$0xf]
    %v260 = vld [vmem:[#allocation8 + $0x44] sm:$0xf]
    %v261 = vld [vmem:[#allocation8 + $0x48] sm:$0xf]
    %v262 = vld [vmem:[#allocation8 + $0x4c] sm:$0xf]
    %v263 = vld [vmem:[#allocation8 + $0x50] sm:$0xf]
    %v264 = vld [vmem:[#allocation8 + $0x54] sm:$0xf]
    %v265 = vld [vmem:[#allocation8 + $0x58] sm:$0xf]
    %v266 = vld [vmem:[#allocation8 + $0x5c] sm:$0xf]
    %v267 = vld [vmem:[#allocation8 + $0x60] sm:$0xf]
    %v268 = vld [vmem:[#allocation8 + $0x64] sm:$0xf]
    %v269 = vld [vmem:[#allocation8 + $0x68] sm:$0xf]
    %v270 = vld [vmem:[#allocation8 + $0x6c] sm:$0xf]
    %v271 = vld [vmem:[#allocation8 + $0x70] sm:$0xf]
    %v272 = vld [vmem:[#allocation8 + $0x74] sm:$0xf]
    %v273 = vld [vmem:[#allocation8 + $0x78] sm:$0xf]
    %v274 = vld [vmem:[#allocation8 + $0x7c] sm:$0xf]
    %v275 = vld [vmem:[#allocation8 + $0x80] sm:$0xf]
    %v276 = vld [vmem:[#allocation8 + $0x84] sm:$0xf]
    %v277 = vld [vmem:[#allocation8 + $0x88] sm:$0xf]
    %v278 = vld [vmem:[#allocation8 + $0x8c] sm:$0xf]
    %v279 = vld [vmem:[#allocation8 + $0x90] sm:$0xf]
    %v280 = vld [vmem:[#allocation8 + $0x94] sm:$0xf]
    %v281 = vld [vmem:[#allocation8 + $0x98] sm:$0xf]
    %v282 = vld [vmem:[#allocation8 + $0x9c] sm:$0xf]
    %v283 = vld [vmem:[#allocation8 + $0xa0] sm:$0xf]
    %v284 = vld [vmem:[#allocation8 + $0xa4] sm:$0xf]
    %v285 = vld [vmem:[#allocation8 + $0xa8] sm:$0xf]
    %v286 = vld [vmem:[#allocation8 + $0xac] sm:$0xf]
    %v287 = vld [vmem:[#allocation8 + $0xb0] sm:$0xf]
    %v288 = vld [vmem:[#allocation8 + $0xb4] sm:$0xf]
    %v289 = vld [vmem:[#allocation8 + $0xb8] sm:$0xf]
    %v290 = vld [vmem:[#allocation8 + $0xbc] sm:$0xf]
    %v291 = vld [vmem:[#allocation8 + $0xc0] sm:$0xf]
    %v292 = vld [vmem:[#allocation8 + $0xc4] sm:$0xf]
    %v293 = vld [vmem:[#allocation8 + $0xc8] sm:$0xf]
    %v294 = vld [vmem:[#allocation8 + $0xcc] sm:$0xf]
    %v295 = vld [vmem:[#allocation8 + $0xd0] sm:$0xf]
    %v296 = vld [vmem:[#allocation8 + $0xd4] sm:$0xf]
    %v297 = vld [vmem:[#allocation8 + $0xd8] sm:$0xf]
    %v298 = vld [vmem:[#allocation8 + $0xdc] sm:$0xf]
    %v299 = vld [vmem:[#allocation8 + $0xe0] sm:$0xf]
    %v300 = vld [vmem:[#allocation8 + $0xe4] sm:$0xf]
    %v301 = vld [vmem:[#allocation8 + $0xe8] sm:$0xf]
    %v302 = vld [vmem:[#allocation8 + $0xec] sm:$0xf]
    %v303 = vld [vmem:[#allocation8 + $0xf0] sm:$0xf]
    %v304 = vld [vmem:[#allocation8 + $0xf4] sm:$0xf]
    %v305 = vld [vmem:[#allocation8 + $0xf8] sm:$0xf]
    %v306 = vld [vmem:[#allocation8 + $0xfc] sm:$0xf]
    %v371 = vunpack.c.l.b16 %v243
    %v372 = vunpack.c.l.b16 %v244
    %v373 = vunpack.c.l.b16 %v245
    %v374 = vunpack.c.l.b16 %v246
    %v375 = vunpack.c.l.b16 %v247
    %v376 = vunpack.c.l.b16 %v248
    %v377 = vunpack.c.l.b16 %v249
    %v378 = vunpack.c.l.b16 %v250
    %v379 = vunpack.c.l.b16 %v251
    %v380 = vunpack.c.l.b16 %v252
    %v381 = vunpack.c.l.b16 %v253
    %v382 = vunpack.c.l.b16 %v254
    %v383 = vunpack.c.l.b16 %v255
    %v384 = vunpack.c.l.b16 %v256
    %v385 = vunpack.c.l.b16 %v257
    %v386 = vunpack.c.l.b16 %v258
    %v387 = vunpack.c.l.b16 %v259
    %v388 = vunpack.c.l.b16 %v260
    %v389 = vunpack.c.l.b16 %v261
    %v390 = vunpack.c.l.b16 %v262
    %v391 = vunpack.c.l.b16 %v263
    %v392 = vunpack.c.l.b16 %v264
    %v393 = vunpack.c.l.b16 %v265
    %v394 = vunpack.c.l.b16 %v266
    %v395 = vunpack.c.l.b16 %v267
    %v396 = vunpack.c.l.b16 %v268
    %v397 = vunpack.c.l.b16 %v269
    %v398 = vunpack.c.l.b16 %v270
    %v399 = vunpack.c.l.b16 %v271
    %v400 = vunpack.c.l.b16 %v272
    %v401 = vunpack.c.l.b16 %v273
    %v402 = vunpack.c.l.b16 %v274
    %v403 = vunpack.c.l.b16 %v275
    %v404 = vunpack.c.l.b16 %v276
    %v405 = vunpack.c.l.b16 %v277
    %v406 = vunpack.c.l.b16 %v278
    %v407 = vunpack.c.l.b16 %v279
    %v408 = vunpack.c.l.b16 %v280
    %v409 = vunpack.c.l.b16 %v281
    %v410 = vunpack.c.l.b16 %v282
    %v411 = vunpack.c.l.b16 %v283
    %v412 = vunpack.c.l.b16 %v284
    %v413 = vunpack.c.l.b16 %v285
    %v414 = vunpack.c.l.b16 %v286
    %v415 = vunpack.c.l.b16 %v287
    %v416 = vunpack.c.l.b16 %v288
    %v417 = vunpack.c.l.b16 %v289
    %v418 = vunpack.c.l.b16 %v290
    %v419 = vunpack.c.l.b16 %v291
    %v420 = vunpack.c.l.b16 %v292
    %v421 = vunpack.c.l.b16 %v293
    %v422 = vunpack.c.l.b16 %v294
    %v423 = vunpack.c.l.b16 %v295
    %v424 = vunpack.c.l.b16 %v296
    %v425 = vunpack.c.l.b16 %v297
    %v426 = vunpack.c.l.b16 %v298
    %v427 = vunpack.c.l.b16 %v299
    %v428 = vunpack.c.l.b16 %v300
    %v429 = vunpack.c.l.b16 %v301
    %v430 = vunpack.c.l.b16 %v302
    %v431 = vunpack.c.l.b16 %v303
    %v432 = vunpack.c.l.b16 %v304
    %v433 = vunpack.c.l.b16 %v305
    %v434 = vunpack.c.l.b16 %v306
    %v435 = vpack.c.b16 %v372, %v371
    %v436 = vpack.c.b16 %v374, %v373
    %v437 = vpack.c.b16 %v376, %v375
    %v438 = vpack.c.b16 %v378, %v377
    %v439 = vpack.c.b16 %v380, %v379
    %v440 = vpack.c.b16 %v382, %v381
    %v441 = vpack.c.b16 %v384, %v383
    %v442 = vpack.c.b16 %v386, %v385
    %v443 = vpack.c.b16 %v388, %v387
    %v444 = vpack.c.b16 %v390, %v389
    %v445 = vpack.c.b16 %v392, %v391
    %v446 = vpack.c.b16 %v394, %v393
    %v447 = vpack.c.b16 %v396, %v395
    %v448 = vpack.c.b16 %v398, %v397
    %v449 = vpack.c.b16 %v400, %v399
    %v450 = vpack.c.b16 %v402, %v401
    %v451 = vpack.c.b16 %v404, %v403
    %v452 = vpack.c.b16 %v406, %v405
    %v453 = vpack.c.b16 %v408, %v407
    %v454 = vpack.c.b16 %v410, %v409
    %v455 = vpack.c.b16 %v412, %v411
    %v456 = vpack.c.b16 %v414, %v413
    %v457 = vpack.c.b16 %v416, %v415
    %v458 = vpack.c.b16 %v418, %v417
    %v459 = vpack.c.b16 %v420, %v419
    %v460 = vpack.c.b16 %v422, %v421
    %v461 = vpack.c.b16 %v424, %v423
    %v462 = vpack.c.b16 %v426, %v425
    %v463 = vpack.c.b16 %v428, %v427
    %v464 = vpack.c.b16 %v430, %v429
    %v465 = vpack.c.b16 %v432, %v431
    %v466 = vpack.c.b16 %v434, %v433
    %499 = vmatprep.subr.bf16.mxu0 0
    %500 = vmatpush1.bf16.msra.mxu0 %v442
    %501 = vmatprep.subr.bf16.mxu0 0
    %502 = vmatpush1.bf16.msra.mxu0 %v441
    %503 = vmatprep.subr.bf16.mxu0 0
    %504 = vmatpush1.bf16.msra.mxu0 %v440
    %505 = vmatprep.subr.bf16.mxu0 0
    %506 = vmatpush1.bf16.msra.mxu0 %v439
    %507 = vmatprep.subr.bf16.mxu0 0
    %508 = vmatpush1.bf16.msra.mxu0 %v438
    %509 = vmatprep.subr.bf16.mxu0 0
    %510 = vmatpush1.bf16.msra.mxu0 %v437
    %511 = vmatprep.subr.bf16.mxu0 0
    %512 = vmatpush1.bf16.msra.mxu0 %v436
    %513 = vmatprep.subr.bf16.mxu0 0
    %514 = vmatpush1.bf16.msra.mxu0 %v435
    %515 = vmatprep.subr.bf16.mxu0 0
    %516 = vmatpush2.bf16.msra.mxu0 %v450
    %517 = vmatprep.subr.bf16.mxu0 0
    %518 = vmatpush2.bf16.msra.mxu0 %v449
    %519 = vmatprep.subr.bf16.mxu0 0
    %520 = vmatpush2.bf16.msra.mxu0 %v448
    %521 = vmatprep.subr.bf16.mxu0 0
    %522 = vmatpush2.bf16.msra.mxu0 %v447
    %523 = vmatprep.subr.bf16.mxu0 0
    %524 = vmatpush2.bf16.msra.mxu0 %v446
    %525 = vmatprep.subr.bf16.mxu0 0
    %526 = vmatpush2.bf16.msra.mxu0 %v445
    %527 = vmatprep.subr.bf16.mxu0 0
    %528 = vmatpush2.bf16.msra.mxu0 %v444
    %529 = vmatprep.subr.bf16.mxu0 0
    %530 = vmatpush2.bf16.msra.mxu0 %v443
    %531 = vmatprep.mubr.bf16.mxu0 %v144
    %532 = vmatmul.mubr.bf16.gmra.mxu0 %v143
    %v533 = vpop.f32.mrf.mxu0
    %v534 = vadd.f32 0.0, %v533
    %v535 = vpop.f32.mrf.mxu0
    %v536 = vpop.f32.mrf.mxu0
    %v537 = vpop.f32.mrf.mxu0
    %538 = vdwg.mxu0
    %539 = vmatprep.subr.bf16.mxu0 0
    %540 = vmatpush1.bf16.msra.mxu0 %v458
    %541 = vmatprep.subr.bf16.mxu0 0
    %542 = vmatpush1.bf16.msra.mxu0 %v457
    %543 = vmatprep.subr.bf16.mxu0 0
    %544 = vmatpush1.bf16.msra.mxu0 %v456
    %545 = vmatprep.subr.bf16.mxu0 0
    %546 = vmatpush1.bf16.msra.mxu0 %v455
    %547 = vmatprep.subr.bf16.mxu0 0
    %548 = vmatpush1.bf16.msra.mxu0 %v454
    %549 = vmatprep.subr.bf16.mxu0 0
    %550 = vmatpush1.bf16.msra.mxu0 %v453
    %551 = vmatprep.subr.bf16.mxu0 0
    %552 = vmatpush1.bf16.msra.mxu0 %v452
    %553 = vmatprep.subr.bf16.mxu0 0
    %554 = vmatpush1.bf16.msra.mxu0 %v451
    %555 = vmatprep.subr.bf16.mxu0 0
    %556 = vmatpush2.bf16.msra.mxu0 %v466
    %557 = vmatprep.subr.bf16.mxu0 0
    %558 = vmatpush2.bf16.msra.mxu0 %v465
    %559 = vmatprep.subr.bf16.mxu0 0
    %560 = vmatpush2.bf16.msra.mxu0 %v464
    %561 = vmatprep.subr.bf16.mxu0 0
    %562 = vmatpush2.bf16.msra.mxu0 %v463
    %563 = vmatprep.subr.bf16.mxu0 0
    %564 = vmatpush2.bf16.msra.mxu0 %v462
    %565 = vmatprep.subr.bf16.mxu0 0
    %566 = vmatpush2.bf16.msra.mxu0 %v461
    %567 = vmatprep.subr.bf16.mxu0 0
    %568 = vmatpush2.bf16.msra.mxu0 %v460
    %569 = vmatprep.subr.bf16.mxu0 0
    %570 = vmatpush2.bf16.msra.mxu0 %v459
    %571 = vmatprep.mubr.bf16.mxu0 %v146
    %572 = vmatmul.mubr.bf16.gmra.mxu0 %v145
    %v573 = vpop.f32.mrf.mxu0
    %v574 = vadd.f32 %v534, %v573
    %v575 = vpop.f32.mrf.mxu0
    %v576 = vpop.f32.mrf.mxu0
    %v577 = vpop.f32.mrf.mxu0
    %578 = vdwg.mxu0
    %v675 = vunpack.c.l.b16 %v147
    %v676 = vunpack.c.l.b16 %v148
    %v677 = vunpack.c.l.b16 %v149
    %v678 = vunpack.c.l.b16 %v150
    %v679 = vunpack.c.l.b16 %v151
    %v680 = vunpack.c.l.b16 %v152
    %v681 = vunpack.c.l.b16 %v153
    %v682 = vunpack.c.l.b16 %v154
    %v683 = vunpack.c.l.b16 %v155
    %v684 = vunpack.c.l.b16 %v156
    %v685 = vunpack.c.l.b16 %v157
    %v686 = vunpack.c.l.b16 %v158
    %v687 = vunpack.c.l.b16 %v159
    %v688 = vunpack.c.l.b16 %v160
    %v689 = vunpack.c.l.b16 %v161
    %v690 = vunpack.c.l.b16 %v162
    %v691 = vunpack.c.l.b16 %v163
    %v692 = vunpack.c.l.b16 %v164
    %v693 = vunpack.c.l.b16 %v165
    %v694 = vunpack.c.l.b16 %v166
    %v695 = vunpack.c.l.b16 %v167
    %v696 = vunpack.c.l.b16 %v168
    %v697 = vunpack.c.l.b16 %v169
    %v698 = vunpack.c.l.b16 %v170
    %v699 = vunpack.c.l.b16 %v171
    %v700 = vunpack.c.l.b16 %v172
    %v701 = vunpack.c.l.b16 %v173
    %v702 = vunpack.c.l.b16 %v174
    %v703 = vunpack.c.l.b16 %v175
    %v704 = vunpack.c.l.b16 %v176
    %v705 = vunpack.c.l.b16 %v177
    %v706 = vunpack.c.l.b16 %v178
    %v707 = vunpack.c.l.b16 %v179
    %v708 = vunpack.c.l.b16 %v180
    %v709 = vunpack.c.l.b16 %v181
    %v710 = vunpack.c.l.b16 %v182
    %v711 = vunpack.c.l.b16 %v183
    %v712 = vunpack.c.l.b16 %v184
    %v713 = vunpack.c.l.b16 %v185
    %v714 = vunpack.c.l.b16 %v186
    %v715 = vunpack.c.l.b16 %v187
    %v716 = vunpack.c.l.b16 %v188
    %v717 = vunpack.c.l.b16 %v189
    %v718 = vunpack.c.l.b16 %v190
    %v719 = vunpack.c.l.b16 %v191
    %v720 = vunpack.c.l.b16 %v192
    %v721 = vunpack.c.l.b16 %v193
    %v722 = vunpack.c.l.b16 %v194
    %v723 = vunpack.c.l.b16 %v195
    %v724 = vunpack.c.l.b16 %v196
    %v725 = vunpack.c.l.b16 %v197
    %v726 = vunpack.c.l.b16 %v198
    %v727 = vunpack.c.l.b16 %v199
    %v728 = vunpack.c.l.b16 %v200
    %v729 = vunpack.c.l.b16 %v201
    %v730 = vunpack.c.l.b16 %v202
    %v731 = vunpack.c.l.b16 %v203
    %v732 = vunpack.c.l.b16 %v204
    %v733 = vunpack.c.l.b16 %v205
    %v734 = vunpack.c.l.b16 %v206
    %v735 = vunpack.c.l.b16 %v207
    %v736 = vunpack.c.l.b16 %v208
    %v737 = vunpack.c.l.b16 %v209
    %v738 = vunpack.c.l.b16 %v210
    %v739 = vunpack.c.l.b16 %v211
    %v740 = vunpack.c.l.b16 %v212
    %v741 = vunpack.c.l.b16 %v213
    %v742 = vunpack.c.l.b16 %v214
    %v743 = vunpack.c.l.b16 %v215
    %v744 = vunpack.c.l.b16 %v216
    %v745 = vunpack.c.l.b16 %v217
    %v746 = vunpack.c.l.b16 %v218
    %v747 = vunpack.c.l.b16 %v219
    %v748 = vunpack.c.l.b16 %v220
    %v749 = vunpack.c.l.b16 %v221
    %v750 = vunpack.c.l.b16 %v222
    %v751 = vunpack.c.l.b16 %v223
    %v752 = vunpack.c.l.b16 %v224
    %v753 = vunpack.c.l.b16 %v225
    %v754 = vunpack.c.l.b16 %v226
    %v755 = vunpack.c.l.b16 %v227
    %v756 = vunpack.c.l.b16 %v228
    %v757 = vunpack.c.l.b16 %v229
    %v758 = vunpack.c.l.b16 %v230
    %v759 = vunpack.c.l.b16 %v231
    %v760 = vunpack.c.l.b16 %v232
    %v761 = vunpack.c.l.b16 %v233
    %v762 = vunpack.c.l.b16 %v234
    %v763 = vunpack.c.l.b16 %v235
    %v764 = vunpack.c.l.b16 %v236
    %v765 = vunpack.c.l.b16 %v237
    %v766 = vunpack.c.l.b16 %v238
    %v767 = vunpack.c.l.b16 %v239
    %v768 = vunpack.c.l.b16 %v240
    %v769 = vunpack.c.l.b16 %v241
    %v770 = vunpack.c.l.b16 %v242
    %v771 = vpack.c.b16 %v676, %v675
    %v772 = vpack.c.b16 %v678, %v677
    %v773 = vpack.c.b16 %v680, %v679
    %v774 = vpack.c.b16 %v682, %v681
    %v775 = vpack.c.b16 %v684, %v683
    %v776 = vpack.c.b16 %v686, %v685
    %v777 = vpack.c.b16 %v688, %v687
    %v778 = vpack.c.b16 %v690, %v689
    %v779 = vpack.c.b16 %v692, %v691
    %v780 = vpack.c.b16 %v694, %v693
    %v781 = vpack.c.b16 %v696, %v695
    %v782 = vpack.c.b16 %v698, %v697
    %v783 = vpack.c.b16 %v700, %v699
    %v784 = vpack.c.b16 %v702, %v701
    %v785 = vpack.c.b16 %v704, %v703
    %v786 = vpack.c.b16 %v706, %v705
    %v787 = vpack.c.b16 %v708, %v707
    %v788 = vpack.c.b16 %v710, %v709
    %v789 = vpack.c.b16 %v712, %v711
    %v790 = vpack.c.b16 %v714, %v713
    %v791 = vpack.c.b16 %v716, %v715
    %v792 = vpack.c.b16 %v718, %v717
    %v793 = vpack.c.b16 %v720, %v719
    %v794 = vpack.c.b16 %v722, %v721
    %v795 = vpack.c.b16 %v724, %v723
    %v796 = vpack.c.b16 %v726, %v725
    %v797 = vpack.c.b16 %v728, %v727
    %v798 = vpack.c.b16 %v730, %v729
    %v799 = vpack.c.b16 %v732, %v731
    %v800 = vpack.c.b16 %v734, %v733
    %v801 = vpack.c.b16 %v736, %v735
    %v802 = vpack.c.b16 %v738, %v737
    %v803 = vpack.c.b16 %v740, %v739
    %v804 = vpack.c.b16 %v742, %v741
    %v805 = vpack.c.b16 %v744, %v743
    %v806 = vpack.c.b16 %v746, %v745
    %v807 = vpack.c.b16 %v748, %v747
    %v808 = vpack.c.b16 %v750, %v749
    %v809 = vpack.c.b16 %v752, %v751
    %v810 = vpack.c.b16 %v754, %v753
    %v811 = vpack.c.b16 %v756, %v755
    %v812 = vpack.c.b16 %v758, %v757
    %v813 = vpack.c.b16 %v760, %v759
    %v814 = vpack.c.b16 %v762, %v761
    %v815 = vpack.c.b16 %v764, %v763
    %v816 = vpack.c.b16 %v766, %v765
    %v817 = vpack.c.b16 %v768, %v767
    %v818 = vpack.c.b16 %v770, %v769
    %867 = vmatprep.subr.bf16.mxu0 0
    %868 = vmatpush1.bf16.msra.mxu0 %v778
    %869 = vmatprep.subr.bf16.mxu0 0
    %870 = vmatpush1.bf16.msra.mxu0 %v777
    %871 = vmatprep.subr.bf16.mxu0 0
    %872 = vmatpush1.bf16.msra.mxu0 %v776
    %873 = vmatprep.subr.bf16.mxu0 0
    %874 = vmatpush1.bf16.msra.mxu0 %v775
    %875 = vmatprep.subr.bf16.mxu0 0
    %876 = vmatpush1.bf16.msra.mxu0 %v774
    %877 = vmatprep.subr.bf16.mxu0 0
    %878 = vmatpush1.bf16.msra.mxu0 %v773
    %879 = vmatprep.subr.bf16.mxu0 0
    %880 = vmatpush1.bf16.msra.mxu0 %v772
    %881 = vmatprep.subr.bf16.mxu0 0
    %882 = vmatpush1.bf16.msra.mxu0 %v771
    %883 = vmatprep.subr.bf16.mxu0 0
    %884 = vmatpush2.bf16.msra.mxu0 %v786
    %885 = vmatprep.subr.bf16.mxu0 0
    %886 = vmatpush2.bf16.msra.mxu0 %v785
    %887 = vmatprep.subr.bf16.mxu0 0
    %888 = vmatpush2.bf16.msra.mxu0 %v784
    %889 = vmatprep.subr.bf16.mxu0 0
    %890 = vmatpush2.bf16.msra.mxu0 %v783
    %891 = vmatprep.subr.bf16.mxu0 0
    %892 = vmatpush2.bf16.msra.mxu0 %v782
    %893 = vmatprep.subr.bf16.mxu0 0
    %894 = vmatpush2.bf16.msra.mxu0 %v781
    %895 = vmatprep.subr.bf16.mxu0 0
    %896 = vmatpush2.bf16.msra.mxu0 %v780
    %897 = vmatprep.subr.bf16.mxu0 0
    %898 = vmatpush2.bf16.msra.mxu0 %v779
    %899 = vmatprep.mubr.bf16.mxu0 %v115
    %900 = vmatmul.mubr.bf16.gmra.mxu0 %v114
    %v901 = vpop.f32.mrf.mxu0
    %v902 = vadd.f32 %v574, %v901
    %v903 = vpop.f32.mrf.mxu0
    %v904 = vpop.f32.mrf.mxu0
    %v905 = vpop.f32.mrf.mxu0
    %906 = vdwg.mxu0
    %907 = vmatprep.subr.bf16.mxu0 0
    %908 = vmatpush1.bf16.msra.mxu0 %v794
    %909 = vmatprep.subr.bf16.mxu0 0
    %910 = vmatpush1.bf16.msra.mxu0 %v793
    %911 = vmatprep.subr.bf16.mxu0 0
    %912 = vmatpush1.bf16.msra.mxu0 %v792
    %913 = vmatprep.subr.bf16.mxu0 0
    %914 = vmatpush1.bf16.msra.mxu0 %v791
    %915 = vmatprep.subr.bf16.mxu0 0
    %916 = vmatpush1.bf16.msra.mxu0 %v790
    %917 = vmatprep.subr.bf16.mxu0 0
    %918 = vmatpush1.bf16.msra.mxu0 %v789
    %919 = vmatprep.subr.bf16.mxu0 0
    %920 = vmatpush1.bf16.msra.mxu0 %v788
    %921 = vmatprep.subr.bf16.mxu0 0
    %922 = vmatpush1.bf16.msra.mxu0 %v787
    %923 = vmatprep.subr.bf16.mxu0 0
    %924 = vmatpush2.bf16.msra.mxu0 %v802
    %925 = vmatprep.subr.bf16.mxu0 0
    %926 = vmatpush2.bf16.msra.mxu0 %v801
    %927 = vmatprep.subr.bf16.mxu0 0
    %928 = vmatpush2.bf16.msra.mxu0 %v800
    %929 = vmatprep.subr.bf16.mxu0 0
    %930 = vmatpush2.bf16.msra.mxu0 %v799
    %931 = vmatprep.subr.bf16.mxu0 0
    %932 = vmatpush2.bf16.msra.mxu0 %v798
    %933 = vmatprep.subr.bf16.mxu0 0
    %934 = vmatpush2.bf16.msra.mxu0 %v797
    %935 = vmatprep.subr.bf16.mxu0 0
    %936 = vmatpush2.bf16.msra.mxu0 %v796
    %937 = vmatprep.subr.bf16.mxu0 0
    %938 = vmatpush2.bf16.msra.mxu0 %v795
    %939 = vmatprep.mubr.bf16.mxu0 %v117
    %940 = vmatmul.mubr.bf16.gmra.mxu0 %v116
    %v941 = vpop.f32.mrf.mxu0
    %v942 = vadd.f32 %v902, %v941
    %v943 = vpop.f32.mrf.mxu0
    %v944 = vpop.f32.mrf.mxu0
    %v945 = vpop.f32.mrf.mxu0
    %946 = vdwg.mxu0
    %947 = vmatprep.subr.bf16.mxu0 0
    %948 = vmatpush1.bf16.msra.mxu0 %v810
    %949 = vmatprep.subr.bf16.mxu0 0
    %950 = vmatpush1.bf16.msra.mxu0 %v809
    %951 = vmatprep.subr.bf16.mxu0 0
    %952 = vmatpush1.bf16.msra.mxu0 %v808
    %953 = vmatprep.subr.bf16.mxu0 0
    %954 = vmatpush1.bf16.msra.mxu0 %v807
    %955 = vmatprep.subr.bf16.mxu0 0
    %956 = vmatpush1.bf16.msra.mxu0 %v806
    %957 = vmatprep.subr.bf16.mxu0 0
    %958 = vmatpush1.bf16.msra.mxu0 %v805
    %959 = vmatprep.subr.bf16.mxu0 0
    %960 = vmatpush1.bf16.msra.mxu0 %v804
    %961 = vmatprep.subr.bf16.mxu0 0
    %962 = vmatpush1.bf16.msra.mxu0 %v803
    %963 = vmatprep.subr.bf16.mxu0 0
    %964 = vmatpush2.bf16.msra.mxu0 %v818
    %965 = vmatprep.subr.bf16.mxu0 0
    %966 = vmatpush2.bf16.msra.mxu0 %v817
    %967 = vmatprep.subr.bf16.mxu0 0
    %968 = vmatpush2.bf16.msra.mxu0 %v816
    %969 = vmatprep.subr.bf16.mxu0 0
    %970 = vmatpush2.bf16.msra.mxu0 %v815
    %971 = vmatprep.subr.bf16.mxu0 0
    %972 = vmatpush2.bf16.msra.mxu0 %v814
    %973 = vmatprep.subr.bf16.mxu0 0
    %974 = vmatpush2.bf16.msra.mxu0 %v813
    %975 = vmatprep.subr.bf16.mxu0 0
    %976 = vmatpush2.bf16.msra.mxu0 %v812
    %977 = vmatprep.subr.bf16.mxu0 0
    %978 = vmatpush2.bf16.msra.mxu0 %v811
    %979 = vmatprep.mubr.bf16.mxu0 %v119
    %980 = vmatmul.mubr.bf16.gmra.mxu0 %v118
    %v981 = vpop.f32.mrf.mxu0
    %v982 = vadd.f32 %v942, %v981
    %v983 = vpop.f32.mrf.mxu0
    %v984 = vpop.f32.mrf.mxu0
    %v985 = vpop.f32.mrf.mxu0
    %986 = vdwg.mxu0
    %v987 = vld [vmem:[%s4] sm:$0x1]
    %v989 = vlaneseq
    %v990 = vshrl.u32 %v989, 7
    %v991 = vsub.s32 0, %v990
    %v992 = vrot.slane %v987, %v991
    %v994 = vadd.f32 %v982, %v992
    %v995 = vmax.f32 %v994, 0.0
    %v996 = vld [vmem:[%s5] sm:$0x1]
    %v998 = vlaneseq
    %v999 = vshrl.u32 %v998, 7
    %v1000 = vsub.s32 0, %v999
    %v1001 = vrot.slane %v996, %v1000
    %v1003 = vmul.f32 %v995, %v1001
    %vm1004 = vcmask 1041408
    %v1005 = vsel %vm1004, %v1003, 0.0
    %1006 = vadd.xlane.f32.xlu0 %v1005
    %v1007 = vpop.xlane.xlu0 %1006
    %s1008 = sld [smem:[#allocation2]]
    %v1009 = vstv %s1008
    %v1010 = vadd.f32 %v1007, %v1009
    %v1011 = vsub.f32 0.0, %v1010
    %v1012 = vmul.f32 %v1011, 1.442695
    %v1013 = vpow.pop %v1012
    %v1014 = vadd.f32 %v1013, 1.0
    %v1015 = vrcp.pop %v1014
    %vm1016 = vcmask 1024
    %1017 = vst.msk [vmem:[%s7] sm:$0x3] %vm1016, %v1015
    // Predicated region
    $region46: #{tpu_custom_call.1} parent=1 // pred_check
      _
    $region47: #{tpu_custom_call.1} parent=1 // pred_check_branch
      %1019 = sbr.rel (0) target = $region49
    $region48: #{tpu_custom_call.1} parent=1 // pred_region
      _
    $region49: #{tpu_custom_call.1} parent=1 // pred_fallthru
      _
    // Predicated region
    $region50: #{tpu_custom_call.1} parent=1 // pred_check
      _
    $region51: #{tpu_custom_call.1} parent=1 // pred_check_branch
      %1021 = sbr.rel (0) target = $region53
    $region52: #{tpu_custom_call.1} parent=1 // pred_region
      _
    $region53: #{tpu_custom_call.1} parent=1 // pred_fallthru
      _
    %1022 = vsyncpa [#allocation4], 1
    %1023 = vsyncpa [#allocation6], 1
    %1024 = vsyncpa [#allocation9], 1

</llo_original>
